<compile_context>
chip_gen: v7x
topology: tpu7x:2x2x1
jax: 0.10.0
libtpu: 0.0.40
codegen_flags: <defaults>
</compile_context>

<pallas_src>
import jax
import jax.numpy as jnp
from jax.experimental import pallas as pl
from jax.experimental.pallas import tpu as pltpu


def _decoder_kernel(zT_ref, ainvT_blk_ref, cT_ref, w1_ref, b1_ref, w2_ref,
                    b2_ref, matzT_ref, outT_ref):
    """One batch block.  All refs are lane-dense along their last dim.

    zT         (Z, TB*D)     f32   input_z^T, columns = (batch, node)
    ainvT_blk  (TB*D, TB*D)  f32   kron(I_TB, A_inv^T), grid-invariant
    cT         (Z, TB*D)     f32   hoisted Wa correction, grid-invariant
    w1         (H, Z)        bf16
    b1         (H, 1)        f32
    w2         (O, H)        bf16
    b2         (O, 1)        f32
    matzT      (Z, TB*D)     f32   output: mat_z^T
    outT       (O, TB*D)     f32   output: out^T
    """
    # Stage 1 (f32 -- mat_z is a module output): mat_z^T = z^T @ kron(I, A_inv^T) + c^T
    matzT = jnp.dot(zT_ref[...], ainvT_blk_ref[...],
                    preferred_element_type=jnp.float32) + cT_ref[...]
    matzT_ref[...] = matzT

    # Stage 2 (bf16 MXU, f32 accumulate): H3^T = relu(W1 @ mat_z^T + b1)
    h3T = jnp.dot(w1_ref[...], matzT.astype(jnp.bfloat16),
                  preferred_element_type=jnp.float32) + b1_ref[...]
    h3T = jnp.maximum(h3T, 0.0)

    # Stage 3 (bf16 MXU, f32 accumulate): out^T = W2 @ H3^T + b2
    outT_ref[...] = jnp.dot(w2_ref[...], h3T.astype(jnp.bfloat16),
                            preferred_element_type=jnp.float32) + b2_ref[...]


def _pick_tb(B, D, *, min_steps=8, max_flat=512):
    """Pick the per-grid-step batch block TB.

    Preference order:
      * TB*D a multiple of 256 (full MXU column width on v6e/v7x), falling
        back to 128 (v5e tile),
      * at least `min_steps` grid steps (pipeline overlap; several steps per
        TensorCore on v7x), falling back to 4 then 2,
      * TB*D <= max_flat so the (TB*D, TB*D) block-diagonal A_inv^T operand
        stays small in VMEM.
    Falls back to TB == B (single full-array block -- always a legal
    BlockSpec) for tiny/odd batches.
    """
    divisors = [t for t in range(1, B + 1) if B % t == 0]
    for align in (256, 128):
        for steps in (min_steps, 4, 2):
            good = [t for t in divisors
                    if (t * D) % align == 0 and B // t >= steps
                    and t * D <= max_flat]
            if good:
                return max(good)
    return B


def mlp_decoder_forward(input_z, origin_A, adj_A_tilt, Wa, params, *, tb=None):
    """Pallas implementation of MLPDecoder.forward.

    (`inputs` and `n_in_node` from the torch signature do not affect the math
    and are omitted.)

    input_z:  (B, D, Z) float32
    origin_A: (D, D)    float32
    Wa:       (Z,)      float32
    params:   dict with 'w1' (H, Z), 'b1' (H,), 'w2' (O, H), 'b2' (O,)
    returns:  (mat_z (B, D, Z), out (B, D, O), adj_A_tilt)
    """
    B, D, Z = input_z.shape
    w1, b1, w2, b2 = params["w1"], params["b1"], params["w2"], params["b2"]
    H = w1.shape[0]
    O = w2.shape[0]

    # TODO(synk): general matrix inverse (preprocess_adj_new1) has no clean
    # Pallas/MXU equivalent; computed in plain-JAX glue.
    a_inv = jnp.linalg.inv(jnp.eye(D, dtype=jnp.float32) - origin_A.T)

    if tb is None:
        tb = _pick_tb(B, D)
    assert B % tb == 0, "TB must divide the batch size"
    grid = (B // tb,)
    flat = tb * D

    # Hoist the Wa correction:
    #   A_inv @ (z + Wa) - Wa == A_inv @ z + c,   c[i, z] = (rowsum(A_inv)[i] - 1) * Wa[z]
    # and lay it out transposed + tiled over the TB block: cT[z, b*D + i] = c[i, z].
    c = (jnp.sum(a_inv, axis=1, keepdims=True) - 1.0) * Wa.reshape(1, Z)   # (D, Z)
    cT_tiled = jnp.tile(c.T, (1, tb))                                       # (Z, TB*D)

    # Block-diagonal ("kron") form of A_inv^T: one lane-dense 2-D matmul does
    # the whole TB-batched Stage 1, and its output columns are already (b, i).
    ainvT_blk = jnp.kron(jnp.eye(tb, dtype=jnp.float32), a_inv.T)           # (TB*D, TB*D)

    # Lane-dense transposed activations: z^T (Z, B*D), columns = (batch, node).
    zT = input_z.transpose(2, 0, 1).reshape(Z, B * D)

    # bf16 weights for the MLP matmuls (f32 accumulation in-kernel); f32 biases
    # as columns so they broadcast over the lane-dense TB*D axis.
    w1_bf = w1.astype(jnp.bfloat16)
    w2_bf = w2.astype(jnp.bfloat16)
    b1_col = b1.reshape(H, 1).astype(jnp.float32)
    b2_col = b2.reshape(O, 1).astype(jnp.float32)

    # Explicit VMEM budget (v7x: 64 MiB physical / 32 MiB default scoped):
    # assume worst-case double-buffering on every block, x4 headroom, 16 MiB floor.
    f32b, bf16b = 4, 2
    per_step = (Z * flat * f32b          # z^T block
                + flat * flat * f32b     # kron(I, A_inv^T)
                + Z * flat * f32b        # c^T
                + H * Z * bf16b + H * f32b
                + O * H * bf16b + O * f32b
                + Z * flat * f32b        # mat_z^T out block
                + O * flat * f32b)       # out^T out block
    vmem_limit = int(max(16 << 20, 4 * per_step))

    mat_zT, out_T = pl.pallas_call(
        _decoder_kernel,
        out_shape=(
            jax.ShapeDtypeStruct((Z, B * D), jnp.float32),    # mat_z^T (lane-dense)
            jax.ShapeDtypeStruct((O, B * D), jnp.float32),    # out^T   (lane-dense)
        ),
        grid_spec=pltpu.PrefetchScalarGridSpec(
            num_scalar_prefetch=0,
            grid=grid,
            in_specs=[
                pl.BlockSpec((Z, flat), lambda b: (0, b)),        # z^T batch block
                pl.BlockSpec((flat, flat), lambda b: (0, 0)),     # kron(I, A_inv^T) (invariant)
                pl.BlockSpec((Z, flat), lambda b: (0, 0)),        # c^T (invariant)
                pl.BlockSpec((H, Z), lambda b: (0, 0)),           # W1 (bf16, invariant)
                pl.BlockSpec((H, 1), lambda b: (0, 0)),           # b1 column
                pl.BlockSpec((O, H), lambda b: (0, 0)),           # W2 (bf16, invariant)
                pl.BlockSpec((O, 1), lambda b: (0, 0)),           # b2 column
            ],
            out_specs=[
                pl.BlockSpec((Z, flat), lambda b: (0, b)),        # mat_z^T
                pl.BlockSpec((O, flat), lambda b: (0, b)),        # out^T
            ],
        ),
        compiler_params=pltpu.CompilerParams(
            dimension_semantics=("parallel",),
            vmem_limit_bytes=vmem_limit),
    )(zT, ainvT_blk, cT_tiled, w1_bf, b1_col, w2_bf, b2_col)

    # Undo the transposed (lane-dense) output layouts -- cheap XLA-side plumbing.
    mat_z = mat_zT.reshape(Z, B, D).transpose(1, 2, 0)    # (B, D, Z)
    out = out_T.reshape(O, B, D).transpose(1, 2, 0)       # (B, D, O)

    return mat_z, out, adj_A_tilt


def init_params(key, n_in_z, n_hid, n_out):
    """Deterministic init matching the module: xavier_normal_ weights, zero bias."""
    k1, k2 = jax.random.split(key)

    def xavier_normal(k, out_f, in_f):
        std = (2.0 / (in_f + out_f)) ** 0.5
        return std * jax.random.normal(k, (out_f, in_f), dtype=jnp.float32)

    return {
        "w1": xavier_normal(k1, n_hid, n_in_z),
        "b1": jnp.zeros((n_hid,), jnp.float32),
        "w2": xavier_normal(k2, n_out, n_hid),
        "b2": jnp.zeros((n_out,), jnp.float32),
    }


if __name__ == "__main__":
    # Small shapes consistent with the module's forward signature.  B=256 with
    # D=8 gives TB=32 -> 8 grid steps of a 256-wide lane block.
    batch_size = 256         # B
    data_variable_size = 8   # D
    n_in_z = 4               # Z
    n_hid = 32               # H
    n_out = 4                # O
    n_in_node = 1            # unused by the forward computation

    key = jax.random.PRNGKey(0)
    k_z, k_a, k_at, k_wa, k_p = jax.random.split(key, 5)

    input_z = jax.random.normal(
        k_z, (batch_size, data_variable_size, n_in_z), dtype=jnp.float32)
    # Keep origin_A small so (I - A^T) is well-conditioned.
    origin_A = 0.1 * jax.random.normal(
        k_a, (data_variable_size, data_variable_size), dtype=jnp.float32)
    adj_A_tilt = jax.random.normal(
        k_at, (data_variable_size, data_variable_size), dtype=jnp.float32)
    Wa = jax.random.normal(k_wa, (n_in_z,), dtype=jnp.float32)
    params = init_params(k_p, n_in_z, n_hid, n_out)

    mat_z, out, adj_tilt_out = mlp_decoder_forward(
        input_z, origin_A, adj_A_tilt, Wa, params)
    jax.block_until_ready((mat_z, out, adj_tilt_out))

    # Pure-JAX reference.
    a_inv = jnp.linalg.inv(
        jnp.eye(data_variable_size, dtype=jnp.float32) - origin_A.T)
    matz_ref = jnp.einsum("ij,bjz->biz", a_inv, input_z + Wa) - Wa
    h3_ref = jax.nn.relu(matz_ref @ params["w1"].T + params["b1"])
    out_ref = h3_ref @ params["w2"].T + params["b2"]

    # mat_z path is f32; the MLP path uses bf16 MXU matmuls (f32 accumulation),
    # hence the looser tolerance on `out`.
    assert jnp.allclose(mat_z, matz_ref, atol=1e-3, rtol=1e-3)
    assert jnp.allclose(out, out_ref, atol=5e-2, rtol=5e-2)
    assert jnp.array_equal(adj_tilt_out, adj_A_tilt)

    print("KERNEL_OK")
</pallas_src>

<mosaic_0001>
module attributes {stable_mosaic.version = 11 : i64} {
  func.func @_decoder_kernel(%arg0: i32, %arg1: memref<4x256xf32, #tpu.memory_space<vmem>>, %arg2: memref<256x256xf32, #tpu.memory_space<vmem>>, %arg3: memref<4x256xf32, #tpu.memory_space<vmem>>, %arg4: memref<32x4xbf16, #tpu.memory_space<vmem>>, %arg5: memref<32x1xf32, #tpu.memory_space<vmem>>, %arg6: memref<4x32xbf16, #tpu.memory_space<vmem>>, %arg7: memref<4x1xf32, #tpu.memory_space<vmem>>, %arg8: memref<4x256xf32, #tpu.memory_space<vmem>>, %arg9: memref<4x256xf32, #tpu.memory_space<vmem>>) attributes {dimension_semantics = [#tpu.dimension_semantics<parallel>], iteration_bounds = array<i64: 8>, scalar_prefetch = 0 : i64, scratch_operands = 0 : i64, tpu.core_type = #tpu.core_type<tc>, window_params = [{transform_indices = @transform_0, window_bounds = array<i64: 4, 256>}, {pipeline_mode = #tpu.pipeline_mode<synchronous>, transform_indices = @transform_1, window_bounds = array<i64: 256, 256>}, {pipeline_mode = #tpu.pipeline_mode<synchronous>, transform_indices = @transform_2, window_bounds = array<i64: 4, 256>}, {pipeline_mode = #tpu.pipeline_mode<synchronous>, transform_indices = @transform_3, window_bounds = array<i64: 32, 4>}, {pipeline_mode = #tpu.pipeline_mode<synchronous>, transform_indices = @transform_4, window_bounds = array<i64: 32, 1>}, {pipeline_mode = #tpu.pipeline_mode<synchronous>, transform_indices = @transform_5, window_bounds = array<i64: 4, 32>}, {pipeline_mode = #tpu.pipeline_mode<synchronous>, transform_indices = @transform_6, window_bounds = array<i64: 4, 1>}, {transform_indices = @transform_7, window_bounds = array<i64: 4, 256>}, {transform_indices = @transform_8, window_bounds = array<i64: 4, 256>}]} {
    %c0 = arith.constant 0 : index
    %c0_0 = arith.constant 0 : index
    %0 = vector.load %arg1[%c0, %c0_0] : memref<4x256xf32, #tpu.memory_space<vmem>>, vector<4x256xf32>
    %c0_1 = arith.constant 0 : index
    %c0_2 = arith.constant 0 : index
    %1 = vector.load %arg2[%c0_1, %c0_2] : memref<256x256xf32, #tpu.memory_space<vmem>>, vector<256x256xf32>
    %cst = arith.constant dense<0.000000e+00> : vector<4x256xf32>
    %2 = tpu.matmul %0, %1, %cst {dimension_numbers = #tpu.dot_dimension_numbers<[1], [0], [0], [1], [0, 0, 1, 1], [], []>} : vector<4x256xf32>, vector<256x256xf32>, vector<4x256xf32> -> vector<4x256xf32>
    %c0_3 = arith.constant 0 : index
    %c0_4 = arith.constant 0 : index
    %3 = vector.load %arg3[%c0_3, %c0_4] : memref<4x256xf32, #tpu.memory_space<vmem>>, vector<4x256xf32>
    %4 = arith.addf %2, %3 : vector<4x256xf32>
    %c0_5 = arith.constant 0 : index
    %c0_6 = arith.constant 0 : index
    %5 = vector.load %arg8[%c0_5, %c0_6] : memref<4x256xf32, #tpu.memory_space<vmem>>, vector<4x256xf32>
    tpu.vector_store %arg8[%c0_5, %c0_6], %4 {strides = array<i32>} : memref<4x256xf32, #tpu.memory_space<vmem>>, vector<4x256xf32>,
    %c0_7 = arith.constant 0 : index
    %c0_8 = arith.constant 0 : index
    %6 = vector.load %arg4[%c0_7, %c0_8] : memref<32x4xbf16, #tpu.memory_space<vmem>>, vector<32x4xbf16>
    %7 = arith.truncf %4 : vector<4x256xf32> to vector<4x256xbf16>
    %cst_9 = arith.constant dense<0.000000e+00> : vector<32x256xf32>
    %8 = tpu.matmul %6, %7, %cst_9 {dimension_numbers = #tpu.dot_dimension_numbers<[1], [0], [0], [1], [0, 0, 1, 1], [], []>} : vector<32x4xbf16>, vector<4x256xbf16>, vector<32x256xf32> -> vector<32x256xf32>
    %c0_10 = arith.constant 0 : index
    %c0_11 = arith.constant 0 : index
    %9 = vector.load %arg5[%c0_10, %c0_11] : memref<32x1xf32, #tpu.memory_space<vmem>>, vector<32x1xf32>
    %10 = vector.broadcast %9 : vector<32x1xf32> to vector<32x256xf32>
    %11 = arith.addf %8, %10 : vector<32x256xf32>
    %cst_12 = arith.constant 0.000000e+00 : f32
    %12 = vector.broadcast %cst_12 : f32 to vector<32x256xf32>
    %13 = arith.maximumf %11, %12 : vector<32x256xf32>
    %c0_13 = arith.constant 0 : index
    %c0_14 = arith.constant 0 : index
    %14 = vector.load %arg6[%c0_13, %c0_14] : memref<4x32xbf16, #tpu.memory_space<vmem>>, vector<4x32xbf16>
    %15 = arith.truncf %13 : vector<32x256xf32> to vector<32x256xbf16>
    %cst_15 = arith.constant dense<0.000000e+00> : vector<4x256xf32>
    %16 = tpu.matmul %14, %15, %cst_15 {dimension_numbers = #tpu.dot_dimension_numbers<[1], [0], [0], [1], [0, 0, 1, 1], [], []>} : vector<4x32xbf16>, vector<32x256xbf16>, vector<4x256xf32> -> vector<4x256xf32>
    %c0_16 = arith.constant 0 : index
    %c0_17 = arith.constant 0 : index
    %17 = vector.load %arg7[%c0_16, %c0_17] : memref<4x1xf32, #tpu.memory_space<vmem>>, vector<4x1xf32>
    %18 = vector.broadcast %17 : vector<4x1xf32> to vector<4x256xf32>
    %19 = arith.addf %16, %18 : vector<4x256xf32>
    %c0_18 = arith.constant 0 : index
    %c0_19 = arith.constant 0 : index
    %20 = vector.load %arg9[%c0_18, %c0_19] : memref<4x256xf32, #tpu.memory_space<vmem>>, vector<4x256xf32>
    tpu.vector_store %arg9[%c0_18, %c0_19], %19 {strides = array<i32>} : memref<4x256xf32, #tpu.memory_space<vmem>>, vector<4x256xf32>,
    return
  }
  func.func @transform_0(%arg0: i32) -> (i32, i32) {
    %c0_i32 = arith.constant 0 : i32
    %c0_i32_0 = arith.constant 0 : i32
    return %c0_i32, %arg0 : i32, i32
  }
  func.func @transform_1(%arg0: i32) -> (i32, i32) {
    %c0_i32 = arith.constant 0 : i32
    %c0_i32_0 = arith.constant 0 : i32
    %c0_i32_1 = arith.constant 0 : i32
    return %c0_i32, %c0_i32_0 : i32, i32
  }
  func.func @transform_2(%arg0: i32) -> (i32, i32) {
    %c0_i32 = arith.constant 0 : i32
    %c0_i32_0 = arith.constant 0 : i32
    %c0_i32_1 = arith.constant 0 : i32
    return %c0_i32, %c0_i32_0 : i32, i32
  }
  func.func @transform_3(%arg0: i32) -> (i32, i32) {
    %c0_i32 = arith.constant 0 : i32
    %c0_i32_0 = arith.constant 0 : i32
    %c0_i32_1 = arith.constant 0 : i32
    return %c0_i32, %c0_i32_0 : i32, i32
  }
  func.func @transform_4(%arg0: i32) -> (i32, i32) {
    %c0_i32 = arith.constant 0 : i32
    %c0_i32_0 = arith.constant 0 : i32
    %c0_i32_1 = arith.constant 0 : i32
    return %c0_i32, %c0_i32_0 : i32, i32
  }
  func.func @transform_5(%arg0: i32) -> (i32, i32) {
    %c0_i32 = arith.constant 0 : i32
    %c0_i32_0 = arith.constant 0 : i32
    %c0_i32_1 = arith.constant 0 : i32
    return %c0_i32, %c0_i32_0 : i32, i32
  }
  func.func @transform_6(%arg0: i32) -> (i32, i32) {
    %c0_i32 = arith.constant 0 : i32
    %c0_i32_0 = arith.constant 0 : i32
    %c0_i32_1 = arith.constant 0 : i32
    return %c0_i32, %c0_i32_0 : i32, i32
  }
  func.func @transform_7(%arg0: i32) -> (i32, i32) {
    %c0_i32 = arith.constant 0 : i32
    %c0_i32_0 = arith.constant 0 : i32
    return %c0_i32, %arg0 : i32, i32
  }
  func.func @transform_8(%arg0: i32) -> (i32, i32) {
    %c0_i32 = arith.constant 0 : i32
    %c0_i32_0 = arith.constant 0 : i32
    return %c0_i32, %arg0 : i32, i32
  }
}

</mosaic_0001>

<llo_original>
// kernel: tpu_custom_call.1
$region0: #{tpu_custom_call.1}
  #allocation0 [shape = 'u32[]', space=smem, size = 0x4, offset = 0x4, fixed_abs, tag = 'smem constant byte address 0x4 - core index']
  #allocation1 [shape = 'u32[144,128]{1,0:T(1,128)}', space=vmem, size = 0x12000, scoped, tag = 'internal scratch']
  %s0 = inlined_call_operand.hbm [shape: f32[4,2048], index: 0, kind: input, shape index: {}]
  %s1 = inlined_call_operand.hbm [shape: f32[256,256], index: 1, kind: input, shape index: {}]
  %s2 = inlined_call_operand.vmem [shape: f32[4,256], index: 2, kind: input, shape index: {}]
  %s3 = inlined_call_operand.vmem [shape: bf16[32,4], index: 3, kind: input, shape index: {}]
  %s4 = inlined_call_operand.vmem [shape: f32[32,1], index: 4, kind: input, shape index: {}]
  %s5 = inlined_call_operand.vmem [shape: bf16[4,32], index: 5, kind: input, shape index: {}]
  %s6 = inlined_call_operand.vmem [shape: f32[4,1], index: 6, kind: input, shape index: {}]
  %s7 = inlined_call_operand.hbm [shape: f32[4,2048], index: 7, kind: output, shape index: {0}]
  %s8 = inlined_call_operand.hbm [shape: f32[4,2048], index: 8, kind: output, shape index: {1}]
  %9 = xla_tuple %s7, %s8
  %s10 = sld [smem:[#allocation0]]
  $region77: #{tpu_custom_call.1} parent=0
    _
  %s12 = ssub.s32 1, %s10
  %s13 = scalar_select 0, %s12, %s10
  $region1: #{tpu_custom_call.1} parent=0
    #allocation2 [shape = 'u8[8192]{0}', space=vmem, size = 0x2000, scoped, tag = 'input window, operand 0']
    #allocation3 [shape = 's32[2]{0}', space=sflag, size = 0x8, scoped, tag = 'scoped memory for tpu_custom_call.1']
    #allocation4 [shape = 's32[2]{0}', space=sflag, size = 0x8, scoped, tag = 'scoped memory for tpu_custom_call.1']
    #allocation5 [shape = 'u8[262144]{0}', space=vmem, size = 0x40000, scoped, tag = 'input window, operand 1, single buffered']
    #allocation6 [shape = 's32[1]{0}', space=sflag, size = 0x4, scoped, tag = 'scoped memory for tpu_custom_call.1']
    #allocation7 [shape = 'u8[8192]{0}', space=vmem, size = 0x2000, scoped, tag = 'output window, operand 0']
    #allocation8 [shape = 'u8[8192]{0}', space=vmem, size = 0x2000, scoped, tag = 'output window, operand 1']
    #allocation9 [shape = 's32[2]{0}', space=sflag, size = 0x8, scoped, tag = 'scoped memory for tpu_custom_call.1']
    %14 = vsyncpa [#allocation3], 0
    %s15 = scalar_lea.sflag [#allocation3], 1
    %16 = vsyncpa %s15, 0
    %17 = vsyncpa [#allocation6], 0
    %18 = vsyncpa [#allocation4], 0
    %s19 = scalar_lea.sflag [#allocation4], 1
    %20 = vsyncpa %s19, 0
    %21 = vsyncpa [#allocation9], 0
    %s22 = scalar_lea.sflag [#allocation9], 1
    %23 = vsyncpa %s22, 0
    loop: start=0, step=1, limit=10
    $region2: #{tpu_custom_call.1} parent=1 // loop_pre_header
      _
    $region3: #{tpu_custom_call.1} parent=1 // loop_header
      %s25 = sphi 0, %s29
      %p26 = scmp.ge.s32.totalorder %s25, 10
      %s35 = sphi 0, %s37
      %s38 = sphi 0, %s35
      %s39 = sphi 0, %s38
      %s55 = sphi 0, %s39
      %s59 = sphi 0, %s59
      %s61 = sphi 0, %s59
      %s62 = sphi 0, %s61
      %s76 = sphi 0, %s62
      %s80 = sphi 0, %s80
      %s82 = sphi 0, %s80
      %s83 = sphi 0, %s82
      %s97 = sphi 0, %s83
      %s101 = sphi 0, %s101
      %s103 = sphi 0, %s101
      %s104 = sphi 0, %s103
      %s118 = sphi 0, %s104
      %s122 = sphi 0, %s122
      %s124 = sphi 0, %s122
      %s125 = sphi 0, %s124
      %s139 = sphi 0, %s125
      %s143 = sphi 0, %s143
      %s145 = sphi 0, %s143
      %s146 = sphi 0, %s145
      %s160 = sphi 0, %s146
      %s164 = sphi 0, %s164
      %s166 = sphi 0, %s164
      %s167 = sphi 0, %s166
      %s181 = sphi 0, %s167
      %s187 = sphi 0, %s189
      %s190 = sphi 0, %s187
      %s191 = sphi 0, %s190
      %s207 = sphi 0, %s191
      %s213 = sphi 0, %s215
      %s216 = sphi 0, %s213
      %s217 = sphi 0, %s216
      %s233 = sphi 0, %s217
    $region4: #{tpu_custom_call.1} parent=1 // loop_header_branch
      %28 = sbr.rel (%p26) target = $region8
    $region5: #{tpu_custom_call.1} parent=1 // loop_body
      %s30 = ssub.s32 %s25, 1
      %s31 = ssub.s32 %s25, 2
      %s32 = sadd.s32 %s25, 1
      %s33 = ssub.s32 %s25, %s32
      %p34 = scmp.eq.s32.totalorder %s33, 0
      %s36 = sadd.s32 %s35, 1
      %s37 = scalar_select %p34, %s35, %s36
      %p40 = pneg %p34
      %p41 = scmp.eq.s32.totalorder %s25, 7
      %p42 = por %p40, %p41
      %p43 = scmp.ne.s32.totalorder %s35, %s38
      %p44 = scmp.eq.s32.totalorder %s25, 0
      %p45 = por %p43, %p44
      %p46 = scmp.ne.s32.totalorder %s35, %s38
      %p47 = scmp.eq.s32.totalorder %s30, 7
      %p48 = por %p46, %p47
      %p49 = scmp.ne.s32.totalorder %s38, %s39
      %p50 = scmp.eq.s32.totalorder %s30, 0
      %p51 = por %p49, %p50
      %p52 = scmp.ne.s32.totalorder %s38, %s39
      %p53 = scmp.eq.s32.totalorder %s31, 7
      %p54 = por %p52, %p53
      %p56 = scmp.ne.s32.totalorder %s39, %s55
      %p57 = scmp.eq.s32.totalorder %s31, 0
      %p58 = por %p56, %p57
      %s60 = sadd.s32 %s59, 1
      %p63 = scmp.eq.s32.totalorder %s25, 7
      %p64 = scmp.ne.s32.totalorder %s59, %s61
      %p65 = scmp.eq.s32.totalorder %s25, 0
      %p66 = por %p64, %p65
      %p67 = scmp.ne.s32.totalorder %s59, %s61
      %p68 = scmp.eq.s32.totalorder %s30, 7
      %p69 = por %p67, %p68
      %p70 = scmp.ne.s32.totalorder %s61, %s62
      %p71 = scmp.eq.s32.totalorder %s30, 0
      %p72 = por %p70, %p71
      %p73 = scmp.ne.s32.totalorder %s61, %s62
      %p74 = scmp.eq.s32.totalorder %s31, 7
      %p75 = por %p73, %p74
      %p77 = scmp.ne.s32.totalorder %s62, %s76
      %p78 = scmp.eq.s32.totalorder %s31, 0
      %p79 = por %p77, %p78
      %s81 = sadd.s32 %s80, 1
      %p84 = scmp.eq.s32.totalorder %s25, 7
      %p85 = scmp.ne.s32.totalorder %s80, %s82
      %p86 = scmp.eq.s32.totalorder %s25, 0
      %p87 = por %p85, %p86
      %p88 = scmp.ne.s32.totalorder %s80, %s82
      %p89 = scmp.eq.s32.totalorder %s30, 7
      %p90 = por %p88, %p89
      %p91 = scmp.ne.s32.totalorder %s82, %s83
      %p92 = scmp.eq.s32.totalorder %s30, 0
      %p93 = por %p91, %p92
      %p94 = scmp.ne.s32.totalorder %s82, %s83
      %p95 = scmp.eq.s32.totalorder %s31, 7
      %p96 = por %p94, %p95
      %p98 = scmp.ne.s32.totalorder %s83, %s97
      %p99 = scmp.eq.s32.totalorder %s31, 0
      %p100 = por %p98, %p99
      %s102 = sadd.s32 %s101, 1
      %p105 = scmp.eq.s32.totalorder %s25, 7
      %p106 = scmp.ne.s32.totalorder %s101, %s103
      %p107 = scmp.eq.s32.totalorder %s25, 0
      %p108 = por %p106, %p107
      %p109 = scmp.ne.s32.totalorder %s101, %s103
      %p110 = scmp.eq.s32.totalorder %s30, 7
      %p111 = por %p109, %p110
      %p112 = scmp.ne.s32.totalorder %s103, %s104
      %p113 = scmp.eq.s32.totalorder %s30, 0
      %p114 = por %p112, %p113
      %p115 = scmp.ne.s32.totalorder %s103, %s104
      %p116 = scmp.eq.s32.totalorder %s31, 7
      %p117 = por %p115, %p116
      %p119 = scmp.ne.s32.totalorder %s104, %s118
      %p120 = scmp.eq.s32.totalorder %s31, 0
      %p121 = por %p119, %p120
      %s123 = sadd.s32 %s122, 1
      %p126 = scmp.eq.s32.totalorder %s25, 7
      %p127 = scmp.ne.s32.totalorder %s122, %s124
      %p128 = scmp.eq.s32.totalorder %s25, 0
      %p129 = por %p127, %p128
      %p130 = scmp.ne.s32.totalorder %s122, %s124
      %p131 = scmp.eq.s32.totalorder %s30, 7
      %p132 = por %p130, %p131
      %p133 = scmp.ne.s32.totalorder %s124, %s125
      %p134 = scmp.eq.s32.totalorder %s30, 0
      %p135 = por %p133, %p134
      %p136 = scmp.ne.s32.totalorder %s124, %s125
      %p137 = scmp.eq.s32.totalorder %s31, 7
      %p138 = por %p136, %p137
      %p140 = scmp.ne.s32.totalorder %s125, %s139
      %p141 = scmp.eq.s32.totalorder %s31, 0
      %p142 = por %p140, %p141
      %s144 = sadd.s32 %s143, 1
      %p147 = scmp.eq.s32.totalorder %s25, 7
      %p148 = scmp.ne.s32.totalorder %s143, %s145
      %p149 = scmp.eq.s32.totalorder %s25, 0
      %p150 = por %p148, %p149
      %p151 = scmp.ne.s32.totalorder %s143, %s145
      %p152 = scmp.eq.s32.totalorder %s30, 7
      %p153 = por %p151, %p152
      %p154 = scmp.ne.s32.totalorder %s145, %s146
      %p155 = scmp.eq.s32.totalorder %s30, 0
      %p156 = por %p154, %p155
      %p157 = scmp.ne.s32.totalorder %s145, %s146
      %p158 = scmp.eq.s32.totalorder %s31, 7
      %p159 = por %p157, %p158
      %p161 = scmp.ne.s32.totalorder %s146, %s160
      %p162 = scmp.eq.s32.totalorder %s31, 0
      %p163 = por %p161, %p162
      %s165 = sadd.s32 %s164, 1
      %p168 = scmp.eq.s32.totalorder %s25, 7
      %p169 = scmp.ne.s32.totalorder %s164, %s166
      %p170 = scmp.eq.s32.totalorder %s25, 0
      %p171 = por %p169, %p170
      %p172 = scmp.ne.s32.totalorder %s164, %s166
      %p173 = scmp.eq.s32.totalorder %s30, 7
      %p174 = por %p172, %p173
      %p175 = scmp.ne.s32.totalorder %s166, %s167
      %p176 = scmp.eq.s32.totalorder %s30, 0
      %p177 = por %p175, %p176
      %p178 = scmp.ne.s32.totalorder %s166, %s167
      %p179 = scmp.eq.s32.totalorder %s31, 7
      %p180 = por %p178, %p179
      %p182 = scmp.ne.s32.totalorder %s167, %s181
      %p183 = scmp.eq.s32.totalorder %s31, 0
      %p184 = por %p182, %p183
      %s185 = ssub.s32 %s25, %s32
      %p186 = scmp.eq.s32.totalorder %s185, 0
      %s188 = sadd.s32 %s187, 1
      %s189 = scalar_select %p186, %s187, %s188
      %p192 = pneg %p186
      %p193 = scmp.eq.s32.totalorder %s25, 7
      %p194 = por %p192, %p193
      %p195 = scmp.ne.s32.totalorder %s187, %s190
      %p196 = scmp.eq.s32.totalorder %s25, 0
      %p197 = por %p195, %p196
      %p198 = scmp.ne.s32.totalorder %s187, %s190
      %p199 = scmp.eq.s32.totalorder %s30, 7
      %p200 = por %p198, %p199
      %p201 = scmp.ne.s32.totalorder %s190, %s191
      %p202 = scmp.eq.s32.totalorder %s30, 0
      %p203 = por %p201, %p202
      %p204 = scmp.ne.s32.totalorder %s190, %s191
      %p205 = scmp.eq.s32.totalorder %s31, 7
      %p206 = por %p204, %p205
      %p208 = scmp.ne.s32.totalorder %s191, %s207
      %p209 = scmp.eq.s32.totalorder %s31, 0
      %p210 = por %p208, %p209
      %s211 = ssub.s32 %s25, %s32
      %p212 = scmp.eq.s32.totalorder %s211, 0
      %s214 = sadd.s32 %s213, 1
      %s215 = scalar_select %p212, %s213, %s214
      %p218 = pneg %p212
      %p219 = scmp.eq.s32.totalorder %s25, 7
      %p220 = por %p218, %p219
      %p221 = scmp.ne.s32.totalorder %s213, %s216
      %p222 = scmp.eq.s32.totalorder %s25, 0
      %p223 = por %p221, %p222
      %p224 = scmp.ne.s32.totalorder %s213, %s216
      %p225 = scmp.eq.s32.totalorder %s30, 7
      %p226 = por %p224, %p225
      %p227 = scmp.ne.s32.totalorder %s216, %s217
      %p228 = scmp.eq.s32.totalorder %s30, 0
      %p229 = por %p227, %p228
      %p230 = scmp.ne.s32.totalorder %s216, %s217
      %p231 = scmp.eq.s32.totalorder %s31, 7
      %p232 = por %p230, %p231
      %p234 = scmp.ne.s32.totalorder %s217, %s233
      %p235 = scmp.eq.s32.totalorder %s31, 0
      %p236 = por %p234, %p235
      %p237 = scmp.le.s32.totalorder 1, %s25
      %p238 = scmp.lt.s32.totalorder %s25, 9
      %p239 = pnand %p237, %p238
      %p240 = pneg %p239
      // Predicated region
      $region9: #{tpu_custom_call.1} parent=5 // pred_check
        _
      $region10: #{tpu_custom_call.1} parent=5 // pred_check_branch
        %242 = sbr.rel (%p239) target = $region12
      $region11: #{tpu_custom_call.1} parent=5 // pred_region
        %s243 = ssub.s32 %s25, 1
        // Predicated region
        $region13: #{tpu_custom_call.1} parent=11 // pred_check
          %p244 = pneg %p72
        $region14: #{tpu_custom_call.1} parent=11 // pred_check_branch
          %246 = sbr.rel (%p244) target = $region16
        $region15: #{tpu_custom_call.1} parent=11 // pred_region
          %s248 = ssub.s32 8192, 8192
          %249 = vsyncadd [#allocation6], %s248
          %s250 = sshll.u32 [#allocation5], 4
          %s251 = int_to_ptr.vmem [resolvable:$true] %s250
          %256 = dma.hbm_to_vmem [thread:$0]  %s1, 8192, %s251, [#allocation6], 256, 256, 16
        $region16: #{tpu_custom_call.1} parent=11 // pred_fallthru
          _
        // Predicated region
        $region17: #{tpu_custom_call.1} parent=11 // pred_check
          %p257 = pneg %p93
        $region18: #{tpu_custom_call.1} parent=11 // pred_check_branch
          %259 = sbr.rel (%p257) target = $region20
        $region19: #{tpu_custom_call.1} parent=11 // pred_region
          _
        $region20: #{tpu_custom_call.1} parent=11 // pred_fallthru
          _
        // Predicated region
        $region21: #{tpu_custom_call.1} parent=11 // pred_check
          %p260 = pneg %p114
        $region22: #{tpu_custom_call.1} parent=11 // pred_check_branch
          %262 = sbr.rel (%p260) target = $region24
        $region23: #{tpu_custom_call.1} parent=11 // pred_region
          _
        $region24: #{tpu_custom_call.1} parent=11 // pred_fallthru
          _
        // Predicated region
        $region25: #{tpu_custom_call.1} parent=11 // pred_check
          %p263 = pneg %p135
        $region26: #{tpu_custom_call.1} parent=11 // pred_check_branch
          %265 = sbr.rel (%p263) target = $region28
        $region27: #{tpu_custom_call.1} parent=11 // pred_region
          _
        $region28: #{tpu_custom_call.1} parent=11 // pred_fallthru
          _
        // Predicated region
        $region29: #{tpu_custom_call.1} parent=11 // pred_check
          %p266 = pneg %p156
        $region30: #{tpu_custom_call.1} parent=11 // pred_check_branch
          %268 = sbr.rel (%p266) target = $region32
        $region31: #{tpu_custom_call.1} parent=11 // pred_region
          _
        $region32: #{tpu_custom_call.1} parent=11 // pred_fallthru
          _
        // Predicated region
        $region33: #{tpu_custom_call.1} parent=11 // pred_check
          %p269 = pneg %p177
        $region34: #{tpu_custom_call.1} parent=11 // pred_check_branch
          %271 = sbr.rel (%p269) target = $region36
        $region35: #{tpu_custom_call.1} parent=11 // pred_region
          _
        $region36: #{tpu_custom_call.1} parent=11 // pred_fallthru
          _
      $region12: #{tpu_custom_call.1} parent=5 // pred_fallthru
        _
      %p272 = scmp.lt.s32.totalorder %s25, 8
      // Predicated region
      $region37: #{tpu_custom_call.1} parent=5 // pred_check
        %p273 = pneg %p272
      $region38: #{tpu_custom_call.1} parent=5 // pred_check_branch
        %275 = sbr.rel (%p273) target = $region40
      $region39: #{tpu_custom_call.1} parent=5 // pred_region
        // Predicated region
        $region41: #{tpu_custom_call.1} parent=39 // pred_check
          %p276 = pneg %p45
        $region42: #{tpu_custom_call.1} parent=39 // pred_check_branch
          %278 = sbr.rel (%p276) target = $region44
        $region43: #{tpu_custom_call.1} parent=39 // pred_region
          %s279 = sand.u32 %s35, 1
          %s280 = scalar_lea.sflag [#allocation3], %s279
          %s281 = sand.u32 %s35, 1
          %s282 = smul.addr %s281, 8
          %s283 = scalar_lea.vmem [#allocation2], %s282
          %s284 = smul.u32 2, %s25
          %s286 = ssub.s32 128, 128
          %287 = vsyncadd %s280, %s286
          %s288 = smul.addr %s284, 64
          %s289 = scalar_lea.hbm %s0, %s288
          %s291 = sshll.u32 %s283, 4
          %s292 = int_to_ptr.vmem [resolvable:$true] %s291
          %294 = dma.hbm_to_vmem [thread:$0]  %s289, 128, %s292, %s280
        $region44: #{tpu_custom_call.1} parent=39 // pred_fallthru
          _
      $region40: #{tpu_custom_call.1} parent=5 // pred_fallthru
        _
      %p295 = scmp.le.s32.totalorder 1, %s25
      %p296 = scmp.lt.s32.totalorder %s25, 9
      %p297 = pnand %p295, %p296
      %p298 = pneg %p297
      // Predicated region
      $region45: #{tpu_custom_call.1} parent=5 // pred_check
        _
      $region46: #{tpu_custom_call.1} parent=5 // pred_check_branch
        %300 = sbr.rel (%p297) target = $region48
      $region47: #{tpu_custom_call.1} parent=5 // pred_region
        %s301 = ssub.s32 %s25, 1
        %s302 = sand.u32 %s38, 1
        %s303 = scalar_lea.sflag [#allocation3], %s302
        %s304 = sand.u32 %s38, 1
        %s305 = smul.addr %s304, 8
        %s306 = scalar_lea.vmem [#allocation2], %s305
        // Predicated region
        $region49: #{tpu_custom_call.1} parent=47 // pred_check
          %p307 = pneg %p51
        $region50: #{tpu_custom_call.1} parent=47 // pred_check_branch
          %309 = sbr.rel (%p307) target = $region52
        $region51: #{tpu_custom_call.1} parent=47 // pred_region
          %310 = dma.done %s303, 128
        $region52: #{tpu_custom_call.1} parent=47 // pred_fallthru
          _
        // Predicated region
        $region53: #{tpu_custom_call.1} parent=47 // pred_check
          %p311 = pneg %p72
        $region54: #{tpu_custom_call.1} parent=47 // pred_check_branch
          %313 = sbr.rel (%p311) target = $region56
        $region55: #{tpu_custom_call.1} parent=47 // pred_region
          %314 = dma.done [#allocation6], 8192
        $region56: #{tpu_custom_call.1} parent=47 // pred_fallthru
          _
        %s315 = sand.u32 %s38, 1
        %s316 = scalar_lea.sflag [#allocation3], %s315
        %s317 = sand.u32 %s38, 1
        %s318 = smul.addr %s317, 8
        %s319 = scalar_lea.vmem [#allocation2], %s318
        %p320 = pneg %p51
        %p321 = pneg %p48
        %p322 = pneg %p72
        %p323 = pneg %p69
        %p324 = pneg %p93
        %p325 = pneg %p90
        %p326 = pneg %p114
        %p327 = pneg %p111
        %p328 = pneg %p135
        %p329 = pneg %p132
        %p330 = pneg %p156
        %p331 = pneg %p153
        %p332 = pneg %p177
        %p333 = pneg %p174
        %p334 = pneg %p203
        %p335 = pneg %p200
        %s336 = sand.u32 %s190, 1
        %s337 = scalar_lea.sflag [#allocation4], %s336
        %s338 = sand.u32 %s190, 1
        %s339 = smul.addr %s338, 8
        %s340 = scalar_lea.vmem [#allocation7], %s339
        %p341 = pneg %p229
        %p342 = pneg %p226
        %s343 = sand.u32 %s216, 1
        %s344 = scalar_lea.sflag [#allocation9], %s343
        %s345 = sand.u32 %s216, 1
        %s346 = smul.addr %s345, 8
        %s347 = scalar_lea.vmem [#allocation8], %s346
        %s348 = smul.u32 2, %s30
        %s349 = smul.u32 2, %s30
        %s350 = smul.u32 2, %s30
        %v352 = vld [vmem:[%s306] sm:$0xff]
        %v353 = vld [vmem:[#allocation5] sm:$0xff]
        %v354 = vld [vmem:[#allocation5 + $0x8] sm:$0xff]
        %v355 = vld [vmem:[#allocation5 + $0x10] sm:$0xff]
        %v356 = vld [vmem:[#allocation5 + $0x18] sm:$0xff]
        %v357 = vld [vmem:[#allocation5 + $0x20] sm:$0xff]
        %v358 = vld [vmem:[#allocation5 + $0x28] sm:$0xff]
        %v359 = vld [vmem:[#allocation5 + $0x30] sm:$0xff]
        %v360 = vld [vmem:[#allocation5 + $0x38] sm:$0xff]
        %v361 = vld [vmem:[#allocation5 + $0x40] sm:$0xff]
        %v362 = vld [vmem:[#allocation5 + $0x48] sm:$0xff]
        %v363 = vld [vmem:[#allocation5 + $0x50] sm:$0xff]
        %v364 = vld [vmem:[#allocation5 + $0x58] sm:$0xff]
        %v365 = vld [vmem:[#allocation5 + $0x60] sm:$0xff]
        %v366 = vld [vmem:[#allocation5 + $0x68] sm:$0xff]
        %v367 = vld [vmem:[#allocation5 + $0x70] sm:$0xff]
        %v368 = vld [vmem:[#allocation5 + $0x78] sm:$0xff]
        %v369 = vld [vmem:[#allocation5 + $0x80] sm:$0xff]
        %v370 = vld [vmem:[#allocation5 + $0x88] sm:$0xff]
        %v371 = vld [vmem:[#allocation5 + $0x90] sm:$0xff]
        %v372 = vld [vmem:[#allocation5 + $0x98] sm:$0xff]
        %v373 = vld [vmem:[#allocation5 + $0xa0] sm:$0xff]
        %v374 = vld [vmem:[#allocation5 + $0xa8] sm:$0xff]
        %v375 = vld [vmem:[#allocation5 + $0xb0] sm:$0xff]
        %v376 = vld [vmem:[#allocation5 + $0xb8] sm:$0xff]
        %v377 = vld [vmem:[#allocation5 + $0xc0] sm:$0xff]
        %v378 = vld [vmem:[#allocation5 + $0xc8] sm:$0xff]
        %v379 = vld [vmem:[#allocation5 + $0xd0] sm:$0xff]
        %v380 = vld [vmem:[#allocation5 + $0xd8] sm:$0xff]
        %v381 = vld [vmem:[#allocation5 + $0xe0] sm:$0xff]
        %v382 = vld [vmem:[#allocation5 + $0xe8] sm:$0xff]
        %v383 = vld [vmem:[#allocation5 + $0xf0] sm:$0xff]
        %v384 = vld [vmem:[#allocation5 + $0xf8] sm:$0xff]
        %v385 = vld [vmem:[#allocation5 + $0x100] sm:$0xff]
        %v386 = vld [vmem:[#allocation5 + $0x108] sm:$0xff]
        %v387 = vld [vmem:[#allocation5 + $0x110] sm:$0xff]
        %v388 = vld [vmem:[#allocation5 + $0x118] sm:$0xff]
        %v389 = vld [vmem:[#allocation5 + $0x120] sm:$0xff]
        %v390 = vld [vmem:[#allocation5 + $0x128] sm:$0xff]
        %v391 = vld [vmem:[#allocation5 + $0x130] sm:$0xff]
        %v392 = vld [vmem:[#allocation5 + $0x138] sm:$0xff]
        %v393 = vld [vmem:[#allocation5 + $0x140] sm:$0xff]
        %v394 = vld [vmem:[#allocation5 + $0x148] sm:$0xff]
        %v395 = vld [vmem:[#allocation5 + $0x150] sm:$0xff]
        %v396 = vld [vmem:[#allocation5 + $0x158] sm:$0xff]
        %v397 = vld [vmem:[#allocation5 + $0x160] sm:$0xff]
        %v398 = vld [vmem:[#allocation5 + $0x168] sm:$0xff]
        %v399 = vld [vmem:[#allocation5 + $0x170] sm:$0xff]
        %v400 = vld [vmem:[#allocation5 + $0x178] sm:$0xff]
        %v401 = vld [vmem:[#allocation5 + $0x180] sm:$0xff]
        %v402 = vld [vmem:[#allocation5 + $0x188] sm:$0xff]
        %v403 = vld [vmem:[#allocation5 + $0x190] sm:$0xff]
        %v404 = vld [vmem:[#allocation5 + $0x198] sm:$0xff]
        %v405 = vld [vmem:[#allocation5 + $0x1a0] sm:$0xff]
        %v406 = vld [vmem:[#allocation5 + $0x1a8] sm:$0xff]
        %v407 = vld [vmem:[#allocation5 + $0x1b0] sm:$0xff]
        %v408 = vld [vmem:[#allocation5 + $0x1b8] sm:$0xff]
        %v409 = vld [vmem:[#allocation5 + $0x1c0] sm:$0xff]
        %v410 = vld [vmem:[#allocation5 + $0x1c8] sm:$0xff]
        %v411 = vld [vmem:[#allocation5 + $0x1d0] sm:$0xff]
        %v412 = vld [vmem:[#allocation5 + $0x1d8] sm:$0xff]
        %v413 = vld [vmem:[#allocation5 + $0x1e0] sm:$0xff]
        %v414 = vld [vmem:[#allocation5 + $0x1e8] sm:$0xff]
        %v415 = vld [vmem:[#allocation5 + $0x1f0] sm:$0xff]
        %v416 = vld [vmem:[#allocation5 + $0x1f8] sm:$0xff]
        %v417 = vld [vmem:[%s2] sm:$0xff]
        %v419 = vcombine.high %v352, %v352
        %v422 = vcombine.high %v417, %v417
        %424 = vmatprep.subr.mxu0 %v354
        %425 = vmatpush1.msra.mxu0 %v353
        %426 = vmatprep.subr.mxu0 %v356
        %427 = vmatpush1.msra.mxu0 %v355
        %428 = vmatprep.subr.mxu0 %v358
        %429 = vmatpush1.msra.mxu0 %v357
        %430 = vmatprep.subr.mxu0 %v360
        %431 = vmatpush1.msra.mxu0 %v359
        %432 = vmatprep.subr.mxu0 %v362
        %433 = vmatpush1.msra.mxu0 %v361
        %434 = vmatprep.subr.mxu0 %v364
        %435 = vmatpush1.msra.mxu0 %v363
        %436 = vmatprep.subr.mxu0 %v366
        %437 = vmatpush1.msra.mxu0 %v365
        %438 = vmatprep.subr.mxu0 %v368
        %439 = vmatpush1.msra.mxu0 %v367
        %440 = vmatprep.subr.mxu0 %v370
        %441 = vmatpush1.msra.mxu0 %v369
        %442 = vmatprep.subr.mxu0 %v372
        %443 = vmatpush1.msra.mxu0 %v371
        %444 = vmatprep.subr.mxu0 %v374
        %445 = vmatpush1.msra.mxu0 %v373
        %446 = vmatprep.subr.mxu0 %v376
        %447 = vmatpush1.msra.mxu0 %v375
        %448 = vmatprep.subr.mxu0 %v378
        %449 = vmatpush1.msra.mxu0 %v377
        %450 = vmatprep.subr.mxu0 %v380
        %451 = vmatpush1.msra.mxu0 %v379
        %452 = vmatprep.subr.mxu0 %v382
        %453 = vmatpush1.msra.mxu0 %v381
        %454 = vmatprep.subr.mxu0 %v384
        %455 = vmatpush1.msra.mxu0 %v383
        %456 = vmatprep.subr.mxu0 %v386
        %457 = vmatpush1.msra.mxu0 %v385
        %458 = vmatprep.subr.mxu0 %v388
        %459 = vmatpush1.msra.mxu0 %v387
        %460 = vmatprep.subr.mxu0 %v390
        %461 = vmatpush1.msra.mxu0 %v389
        %462 = vmatprep.subr.mxu0 %v392
        %463 = vmatpush1.msra.mxu0 %v391
        %464 = vmatprep.subr.mxu0 %v394
        %465 = vmatpush1.msra.mxu0 %v393
        %466 = vmatprep.subr.mxu0 %v396
        %467 = vmatpush1.msra.mxu0 %v395
        %468 = vmatprep.subr.mxu0 %v398
        %469 = vmatpush1.msra.mxu0 %v397
        %470 = vmatprep.subr.mxu0 %v400
        %471 = vmatpush1.msra.mxu0 %v399
        %472 = vmatprep.subr.mxu0 %v402
        %473 = vmatpush1.msra.mxu0 %v401
        %474 = vmatprep.subr.mxu0 %v404
        %475 = vmatpush1.msra.mxu0 %v403
        %476 = vmatprep.subr.mxu0 %v406
        %477 = vmatpush1.msra.mxu0 %v405
        %478 = vmatprep.subr.mxu0 %v408
        %479 = vmatpush1.msra.mxu0 %v407
        %480 = vmatprep.subr.mxu0 %v410
        %481 = vmatpush1.msra.mxu0 %v409
        %482 = vmatprep.subr.mxu0 %v412
        %483 = vmatpush1.msra.mxu0 %v411
        %484 = vmatprep.subr.mxu0 %v414
        %485 = vmatpush1.msra.mxu0 %v413
        %486 = vmatprep.subr.mxu0 %v416
        %487 = vmatpush1.msra.mxu0 %v415
        %488 = vmatprep.mubr.f32.mxu0 %v419
        %489 = vmatmul.mubr.f32.gmra.mrb[0].mxu0 %v352
        %v490 = vpop.f32.mrb[0].mxu0
        %v491 = vadd.f32 %v417, %v490
        %v492 = vpop.f32.mrb[0].mxu0
        %v493 = vadd.f32 %v422, %v492
        %494 = vdwg.mxu0
        %v497 = vcombine.low %v491, %v493
        %499 = vst [vmem:[%s340] sm:$0xff] %v497
        %v500 = vld [vmem:[%s3] sm:$0xf]
        %v501 = vld [vmem:[%s3 + $0x4] sm:$0xf]
        %v502 = vld [vmem:[%s3 + $0x8] sm:$0xf]
        %v503 = vld [vmem:[%s3 + $0xc] sm:$0xf]
        %v504 = vpack.c.bf16 %v491, %v491
        %v505 = vpack.c.bf16 %v493, %v493
        %v506 = vld [vmem:[%s4] sm:$0xff]
        %v507 = vld [vmem:[%s4 + $0x8] sm:$0xff]
        %v508 = vld [vmem:[%s4 + $0x10] sm:$0xff]
        %v509 = vld [vmem:[%s4 + $0x18] sm:$0xff]
        %511 = vset.pattern.permute.xlu0 0
        %512 = vperm.xlu0 %511, %v506
        %v513 = vpop.permute.xlu0 %512
        %516 = vset.pattern.permute.xlu0 0
        %517 = vperm.xlu0 %516, %v507
        %v518 = vpop.permute.xlu0 %517
        %521 = vset.pattern.permute.xlu0 0
        %522 = vperm.xlu0 %521, %v508
        %v523 = vpop.permute.xlu0 %522
        %526 = vset.pattern.permute.xlu0 0
        %527 = vperm.xlu0 %526, %v509
        %v528 = vpop.permute.xlu0 %527
        %v534 = vunpack.c.l.b16 %v500
        %v535 = vunpack.c.l.b16 %v501
        %v536 = vunpack.c.l.b16 %v502
        %v537 = vunpack.c.l.b16 %v503
        %v538 = vpack.c.b16 %v535, %v534
        %v539 = vpack.c.b16 %v537, %v536
        %vm540 = vcmask 31744
        %v542 = vsel %vm540, %v538, 0
        %v545 = vsel %vm540, %v539, 0
        %vm547 = vcmask 1041408
        %v549 = vsel %vm547, %v504, 0
        %v552 = vsel %vm547, %v505, 0
        %554 = vmatprep.subr.bf16.mxu0 %v552
        %555 = vmatpush1.bf16.msra.mxu0 %v549
        %556 = vmatprep.subr.bf16.mxu0 0
        %557 = vmatpush1.bf16.msra.mxu0 0
        %558 = vmatprep.subr.bf16.mxu0 0
        %559 = vmatpush1.bf16.msra.mxu0 0
        %560 = vmatprep.subr.bf16.mxu0 0
        %561 = vmatpush1.bf16.msra.mxu0 0
        %562 = vmatprep.subr.bf16.mxu0 0
        %563 = vmatpush1.bf16.msra.mxu0 0
        %564 = vmatprep.subr.bf16.mxu0 0
        %565 = vmatpush1.bf16.msra.mxu0 0
        %566 = vmatprep.subr.bf16.mxu0 0
        %567 = vmatpush1.bf16.msra.mxu0 0
        %568 = vmatprep.subr.bf16.mxu0 0
        %569 = vmatpush1.bf16.msra.mxu0 0
        %570 = vmatprep.subr.bf16.mxu0 0
        %571 = vmatpush1.bf16.msra.mxu0 0
        %572 = vmatprep.subr.bf16.mxu0 0
        %573 = vmatpush1.bf16.msra.mxu0 0
        %574 = vmatprep.subr.bf16.mxu0 0
        %575 = vmatpush1.bf16.msra.mxu0 0
        %576 = vmatprep.subr.bf16.mxu0 0
        %577 = vmatpush1.bf16.msra.mxu0 0
        %578 = vmatprep.subr.bf16.mxu0 0
        %579 = vmatpush1.bf16.msra.mxu0 0
        %580 = vmatprep.subr.bf16.mxu0 0
        %581 = vmatpush1.bf16.msra.mxu0 0
        %582 = vmatprep.subr.bf16.mxu0 0
        %583 = vmatpush1.bf16.msra.mxu0 0
        %584 = vmatprep.subr.bf16.mxu0 0
        %585 = vmatpush1.bf16.msra.mxu0 0
        %586 = vmatprep.mubr.bf16.mxu0 0
        %587 = vmatmul.mubr.bf16.gmra.mrb[0].mxu0 %v542
        %v588 = vpop.f32.mrb[0].mxu0
        %v589 = vadd.f32 %v513, %v588
        %v590 = vpop.f32.mrb[0].mxu0
        %v591 = vadd.f32 %v513, %v590
        %v592 = vpop.f32.mrb[0].mxu0
        %v593 = vadd.f32 %v518, %v592
        %v594 = vpop.f32.mrb[0].mxu0
        %v595 = vadd.f32 %v518, %v594
        %596 = vmatprep.mubr.bf16.mxu0 0
        %597 = vmatmul.mubr.bf16.gmra.mrb[0].mxu0 %v545
        %v598 = vpop.f32.mrb[0].mxu0
        %v599 = vadd.f32 %v523, %v598
        %v600 = vpop.f32.mrb[0].mxu0
        %v601 = vadd.f32 %v523, %v600
        %v602 = vpop.f32.mrb[0].mxu0
        %v603 = vadd.f32 %v528, %v602
        %v604 = vpop.f32.mrb[0].mxu0
        %v605 = vadd.f32 %v528, %v604
        %606 = vdwg.mxu0
        %v607 = vmax.f32 %v589, 0.0
        %v608 = vmax.f32 %v591, 0.0
        %v609 = vmax.f32 %v593, 0.0
        %v610 = vmax.f32 %v595, 0.0
        %v611 = vmax.f32 %v599, 0.0
        %v612 = vmax.f32 %v601, 0.0
        %v613 = vmax.f32 %v603, 0.0
        %v614 = vmax.f32 %v605, 0.0
        %v615 = vld [vmem:[%s5] sm:$0x3]
        %v616 = vpack.c.bf16 %v609, %v607
        %v617 = vpack.c.bf16 %v610, %v608
        %v618 = vpack.c.bf16 %v613, %v611
        %v619 = vpack.c.bf16 %v614, %v612
        %v620 = vld [vmem:[%s6] sm:$0xf]
        %622 = vset.pattern.permute.xlu0 0
        %623 = vperm.xlu0 %622, %v620
        %v624 = vpop.permute.xlu0 %623
        %vm626 = vcmask 261120
        %v628 = vsel %vm626, %v615, 0
        %630 = vmatprep.subr.bf16.mxu0 %v617
        %631 = vmatpush1.bf16.msra.mxu0 %v616
        %632 = vmatprep.subr.bf16.mxu0 %v619
        %633 = vmatpush1.bf16.msra.mxu0 %v618
        %634 = vmatprep.subr.bf16.mxu0 0
        %635 = vmatpush1.bf16.msra.mxu0 0
        %636 = vmatprep.subr.bf16.mxu0 0
        %637 = vmatpush1.bf16.msra.mxu0 0
        %638 = vmatprep.subr.bf16.mxu0 0
        %639 = vmatpush1.bf16.msra.mxu0 0
        %640 = vmatprep.subr.bf16.mxu0 0
        %641 = vmatpush1.bf16.msra.mxu0 0
        %642 = vmatprep.subr.bf16.mxu0 0
        %643 = vmatpush1.bf16.msra.mxu0 0
        %644 = vmatprep.subr.bf16.mxu0 0
        %645 = vmatpush1.bf16.msra.mxu0 0
        %646 = vmatprep.subr.bf16.mxu0 0
        %647 = vmatpush1.bf16.msra.mxu0 0
        %648 = vmatprep.subr.bf16.mxu0 0
        %649 = vmatpush1.bf16.msra.mxu0 0
        %650 = vmatprep.subr.bf16.mxu0 0
        %651 = vmatpush1.bf16.msra.mxu0 0
        %652 = vmatprep.subr.bf16.mxu0 0
        %653 = vmatpush1.bf16.msra.mxu0 0
        %654 = vmatprep.subr.bf16.mxu0 0
        %655 = vmatpush1.bf16.msra.mxu0 0
        %656 = vmatprep.subr.bf16.mxu0 0
        %657 = vmatpush1.bf16.msra.mxu0 0
        %658 = vmatprep.subr.bf16.mxu0 0
        %659 = vmatpush1.bf16.msra.mxu0 0
        %660 = vmatprep.subr.bf16.mxu0 0
        %661 = vmatpush1.bf16.msra.mxu0 0
        %662 = vmatprep.mubr.bf16.mxu0 0
        %663 = vmatmul.mubr.bf16.gmra.mrb[0].mxu0 %v628
        %v664 = vpop.f32.mrb[0].mxu0
        %v665 = vadd.f32 %v624, %v664
        %v666 = vpop.f32.mrb[0].mxu0
        %v667 = vadd.f32 %v624, %v666
        %v668 = vpop.f32.mrb[0].mxu0
        %v669 = vpop.f32.mrb[0].mxu0
        %670 = vdwg.mxu0
        %v673 = vcombine.low %v665, %v667
        %675 = vst [vmem:[%s347] sm:$0xff] %v673
        %s676 = sand.u32 %s190, 1
        %s677 = scalar_lea.sflag [#allocation4], %s676
        %s678 = sand.u32 %s190, 1
        %s679 = smul.addr %s678, 8
        %s680 = scalar_lea.vmem [#allocation7], %s679
        %s681 = sand.u32 %s216, 1
        %s682 = scalar_lea.sflag [#allocation9], %s681
        %s683 = sand.u32 %s216, 1
        %s684 = smul.addr %s683, 8
        %s685 = scalar_lea.vmem [#allocation8], %s684
        // Predicated region
        $region57: #{tpu_custom_call.1} parent=47 // pred_check
          %p686 = pneg %p200
        $region58: #{tpu_custom_call.1} parent=47 // pred_check_branch
          %688 = sbr.rel (%p686) target = $region60
        $region59: #{tpu_custom_call.1} parent=47 // pred_region
          %s689 = smul.u32 2, %s30
          %s691 = ssub.s32 128, 128
          %692 = vsyncadd %s677, %s691
          %s693 = smul.addr %s689, 64
          %s694 = scalar_lea.hbm %s7, %s693
          %s696 = sshll.u32 %s680, 4
          %s697 = int_to_ptr.vmem [resolvable:$true] %s696
          %699 = dma.vmem_to_hbm [thread:$0]  %s697, 128, %s694, %s677
        $region60: #{tpu_custom_call.1} parent=47 // pred_fallthru
          _
        // Predicated region
        $region61: #{tpu_custom_call.1} parent=47 // pred_check
          %p700 = pneg %p226
        $region62: #{tpu_custom_call.1} parent=47 // pred_check_branch
          %702 = sbr.rel (%p700) target = $region64
        $region63: #{tpu_custom_call.1} parent=47 // pred_region
          %s703 = smul.u32 2, %s30
          %s705 = ssub.s32 128, 128
          %706 = vsyncadd %s682, %s705
          %s707 = smul.addr %s703, 64
          %s708 = scalar_lea.hbm %s8, %s707
          %s710 = sshll.u32 %s685, 4
          %s711 = int_to_ptr.vmem [resolvable:$true] %s710
          %713 = dma.vmem_to_hbm [thread:$0]  %s711, 128, %s708, %s682
        $region64: #{tpu_custom_call.1} parent=47 // pred_fallthru
          _
      $region48: #{tpu_custom_call.1} parent=5 // pred_fallthru
        _
      %p714 = scmp.le.s32.totalorder 2, %s25
      // Predicated region
      $region65: #{tpu_custom_call.1} parent=5 // pred_check
        %p715 = pneg %p714
      $region66: #{tpu_custom_call.1} parent=5 // pred_check_branch
        %717 = sbr.rel (%p715) target = $region68
      $region67: #{tpu_custom_call.1} parent=5 // pred_region
        %s718 = ssub.s32 %s25, 2
        // Predicated region
        $region69: #{tpu_custom_call.1} parent=67 // pred_check
          %p719 = pneg %p206
        $region70: #{tpu_custom_call.1} parent=67 // pred_check_branch
          %721 = sbr.rel (%p719) target = $region72
        $region71: #{tpu_custom_call.1} parent=67 // pred_region
          %s722 = sand.u32 %s191, 1
          %s723 = scalar_lea.sflag [#allocation4], %s722
          %s724 = sand.u32 %s191, 1
          %s725 = smul.addr %s724, 8
          %s726 = scalar_lea.vmem [#allocation7], %s725
          %727 = dma.done %s723, 128
        $region72: #{tpu_custom_call.1} parent=67 // pred_fallthru
          _
        // Predicated region
        $region73: #{tpu_custom_call.1} parent=67 // pred_check
          %p728 = pneg %p232
        $region74: #{tpu_custom_call.1} parent=67 // pred_check_branch
          %730 = sbr.rel (%p728) target = $region76
        $region75: #{tpu_custom_call.1} parent=67 // pred_region
          %s731 = sand.u32 %s217, 1
          %s732 = scalar_lea.sflag [#allocation9], %s731
          %s733 = sand.u32 %s217, 1
          %s734 = smul.addr %s733, 8
          %s735 = scalar_lea.vmem [#allocation8], %s734
          %736 = dma.done %s732, 128
        $region76: #{tpu_custom_call.1} parent=67 // pred_fallthru
          _
      $region68: #{tpu_custom_call.1} parent=5 // pred_fallthru
        _
    $region6: #{tpu_custom_call.1} parent=1 // loop_footer
      %s29 = sadd.s32 1, %s25
    $region7: #{tpu_custom_call.1} parent=1 // loop_footer_branch
      %24 = sbr.rel target = $region3
    $region8: #{tpu_custom_call.1} parent=1 // loop_exit
      _
    %737 = vsyncpa [#allocation3], 1
    %s738 = scalar_lea.sflag [#allocation3], 1
    %739 = vsyncpa %s738, 1
    %740 = vsyncpa [#allocation6], 1
    %741 = vsyncpa [#allocation4], 1
    %s742 = scalar_lea.sflag [#allocation4], 1
    %743 = vsyncpa %s742, 1
    %744 = vsyncpa [#allocation9], 1
    %s745 = scalar_lea.sflag [#allocation9], 1
    %746 = vsyncpa %s745, 1

</llo_original>
